<compile_context>
chip_gen: v6e
topology: v6e:2x2x1
jax: 0.10.0
libtpu: 0.0.40
codegen_flags: <defaults>
</compile_context>

<pallas_src>
import functools

import jax
import jax.numpy as jnp
from jax.experimental import pallas as pl
from jax.experimental.pallas import tpu as pltpu

_LANE = 128
_SMALL_BYTES = 5 * 1024 * 1024          # no-grid path: total padded VMEM bytes
_TARGET_TILE_BYTES = 6 * 1024 * 1024    # padded output bytes per grid step
_MIN_TILE_BYTES = 512 * 1024            # don't shrink tiles below this for megacore
_VMEM_WORKSET_BYTES = 40 * 1024 * 1024  # double-buffered (in+out) cap per step
_VMEM_LIMIT_BYTES = 48 * 1024 * 1024    # scoped-VMEM limit for the tiled path


def _round_up(x, m):
    return ((x + m - 1) // m) * m


def _sublane_pack(dtype):
    # VMEM tiles pad rows to 8 (f32) / 16 (bf16) / 32 (int8); never below 8.
    return max(8, 32 // jnp.dtype(dtype).itemsize)


def _padded_block_bytes(rows, cols, itemsize, sub):
    return _round_up(rows, sub) * _round_up(cols, _LANE) * itemsize


def _cat_copy_kernel(*refs, offsets, sizes, axis):
    """refs = (x_ref_0, ..., x_ref_{N-1}, o_ref); all blocks are 2-D."""
    o_ref = refs[-1]
    # TODO(synk): copy whole pack-aligned slabs and handle only the boundary
    # rows/lanes with masked stores when `off` is not 8/128-aligned.
    for x_ref, off, sz in zip(refs[:-1], offsets, sizes):
        if axis == 0:
            o_ref[off:off + sz, :] = x_ref[...]
        else:
            o_ref[:, off:off + sz] = x_ref[...]


def _cat_dma_kernel(*refs, offsets, sizes, axis):
    """Pure HBM->HBM copy: refs = (x_hbm_0, ..., x_hbm_{N-1}, o_hbm, sem)."""
    o_ref, sem = refs[-2], refs[-1]
    copies = []
    for i, (x_ref, off, sz) in enumerate(zip(refs[:-2], offsets, sizes)):
        dst = o_ref.at[off:off + sz, :] if axis == 0 else o_ref.at[:, off:off + sz]
        cp = pltpu.make_async_copy(x_ref, dst, sem.at[i])
        cp.start()
        copies.append(cp)
    # TODO(synk): chunk multi-GiB inputs into several DMAs (2-4 in flight)
    # instead of one descriptor per input.
    for cp in copies:
        cp.wait()


def _choose_tile(K, concat_sizes, concat_total, itemsize, tile_align, concat_pad):
    """Tile size along the non-concat axis, or None if VMEM can't hold it."""
    pad_out = _round_up(concat_total, concat_pad)
    pad_in = sum(_round_up(c, concat_pad) for c in concat_sizes)
    slice_bytes = (pad_out + pad_in) * itemsize        # one unit along tiled axis
    budget = _VMEM_WORKSET_BYTES // (2 * slice_bytes)  # x2: double buffering
    if budget < min(K, tile_align):
        return None                                    # -> HBM->HBM DMA path
    target = max(_TARGET_TILE_BYTES // (pad_out * itemsize), tile_align)
    t = min(K, budget, target)
    if t < K:
        t = max(tile_align, (t // tile_align) * tile_align)
    else:
        t = K
    # Split into >= 8 blocks when there is enough data so both v7x TensorCores
    # get work (harmless on single-core v5e/v6e: pipelined copy, same bytes).
    while (pl.cdiv(K, t) < 8 and t > tile_align
           and t * pad_out * itemsize > _MIN_TILE_BYTES):
        cand = max(tile_align, ((t // 2) // tile_align) * tile_align)
        if cand == t:
            break
        t = cand
    return int(t)


def cat(xs, dim=0):
    """JAX/Pallas equivalent of torch.cat(xs, dim)."""
    if not xs:
        raise ValueError("cat() expects a non-empty list of arrays")
    xs = list(xs)
    ndim = xs[0].ndim
    if ndim == 0:
        raise ValueError("cat() does not accept 0-d arrays")
    d = dim % ndim

    out_dtype = jnp.result_type(*[x.dtype for x in xs])
    xs = [x.astype(out_dtype) for x in xs]

    # torch.cat allows inputs that are empty along the concat dim.
    non_empty = [x for x in xs if x.shape[d] > 0]
    xs = non_empty if non_empty else xs[:1]
    if len(xs) == 1:
        return xs[0]

    base = xs[0].shape
    for x in xs[1:]:
        if x.shape[:d] != base[:d] or x.shape[d + 1:] != base[d + 1:]:
            raise ValueError("cat(): non-concat dimensions must match")

    L = 1
    for s in base[:d]:
        L *= int(s)
    T = 1
    for s in base[d + 1:]:
        T *= int(s)
    Cs = [int(x.shape[d]) for x in xs]
    C_total = sum(Cs)
    out_shape_nd = base[:d] + (C_total,) + base[d + 1:]

    if L == 0 or T == 0:
        return jnp.zeros(out_shape_nd, out_dtype)

    itemsize = jnp.dtype(out_dtype).itemsize
    sub = _sublane_pack(out_dtype)

    # ---- pick a 2-D view (pure metadata reshape) ---------------------------
    if L == 1 and T >= _LANE:
        # Concat along rows (sublanes); trailing dims stay lane-dense.
        axis2d = 0
        sizes = Cs
        xs2 = [x.reshape(c, T) for x, c in zip(xs, Cs)]
        out2 = (C_total, T)
        K, tile_align, concat_pad = T, _LANE, sub
    else:
        # Fold the concat dim together with the trailing dims into the lane
        # axis: lane-dense output stores even for dim=-1 / small T.
        axis2d = 1
        sizes = [c * T for c in Cs]
        xs2 = [x.reshape(L, w) for x, w in zip(xs, sizes)]
        out2 = (L, C_total * T)
        K, tile_align, concat_pad = L, sub, _LANE

    offsets = [sum(sizes[:i]) for i in range(len(sizes))]
    out_struct = jax.ShapeDtypeStruct(out2, out_dtype)
    copy_kernel = functools.partial(_cat_copy_kernel, offsets=offsets,
                                    sizes=sizes, axis=axis2d)

    padded_total = (_padded_block_bytes(out2[0], out2[1], itemsize, sub)
                    + sum(_padded_block_bytes(x.shape[0], x.shape[1],
                                              itemsize, sub) for x in xs2))

    if padded_total <= _SMALL_BYTES:
        # Whole arrays resident in VMEM; zero grid / pipeline overhead.
        out_2d = pl.pallas_call(copy_kernel, out_shape=out_struct)(*xs2)
        return out_2d.reshape(out_shape_nd)

    t = _choose_tile(K, sizes, sum(sizes), itemsize, tile_align, concat_pad)

    if t is not None:
        grid = (pl.cdiv(K, t),)
        if axis2d == 0:
            in_specs = [pl.BlockSpec((c, t), lambda i: (0, i)) for c in sizes]
            out_specs = pl.BlockSpec((sum(sizes), t), lambda i: (0, i))
        else:
            in_specs = [pl.BlockSpec((t, w), lambda i: (i, 0)) for w in sizes]
            out_specs = pl.BlockSpec((t, sum(sizes)), lambda i: (i, 0))
        out_2d = pl.pallas_call(
            copy_kernel,
            out_shape=out_struct,
            grid=grid,
            in_specs=in_specs,
            out_specs=out_specs,
            compiler_params=pltpu.CompilerParams(
                dimension_semantics=("parallel",),
                vmem_limit_bytes=_VMEM_LIMIT_BYTES),
        )(*xs2)
        return out_2d.reshape(out_shape_nd)

    # Full-concat-axis working set does not fit in VMEM at any legal tile:
    # cat is pure data movement, so bypass VMEM with per-input HBM->HBM DMAs.
    dma_kernel = functools.partial(_cat_dma_kernel, offsets=offsets,
                                   sizes=sizes, axis=axis2d)
    out_2d = pl.pallas_call(
        dma_kernel,
        out_shape=out_struct,
        in_specs=[pl.BlockSpec(memory_space=pl.ANY)] * len(xs2),
        out_specs=pl.BlockSpec(memory_space=pl.ANY),
        scratch_shapes=[pltpu.SemaphoreType.DMA((len(xs2),))],
    )(*xs2)
    return out_2d.reshape(out_shape_nd)


if __name__ == "__main__":
    key = jax.random.PRNGKey(0)
    k1, k2, k3, k4, k5 = jax.random.split(key, 5)
    B, C, H, W = 2, 4, 16, 16
    x1 = jax.random.normal(k1, (B, C, H, W), dtype=jnp.float32)
    x2 = jax.random.normal(k2, (B, C, H, W), dtype=jnp.float32)
    x3 = jax.random.normal(k3, (3, C, H, W), dtype=jnp.float32)  # ragged along dim 0

    # Module default: dim=0 (small, no-grid, row-concat view).
    y = jax.block_until_ready(cat([x1, x2, x3], dim=0))
    ref = jnp.concatenate([x1, x2, x3], axis=0)
    assert y.shape == ref.shape and jnp.array_equal(y, ref), "dim=0 mismatch"

    # Non-zero concat dim (small, no-grid, lane-concat view).
    y1 = jax.block_until_ready(cat([x1, x2], dim=1))
    assert jnp.array_equal(y1, jnp.concatenate([x1, x2], axis=1)), "dim=1 mismatch"

    # Last-dim concat (T == 1): exercises the flattened lane-dense view.
    y2 = jax.block_until_ready(cat([x1, x2], dim=-1))
    assert jnp.array_equal(y2, jnp.concatenate([x1, x2], axis=-1)), "dim=-1 mismatch"

    # Medium sizes to exercise the tiled (pipelined) paths on both 2-D views.
    a = jax.random.normal(k4, (512, 1024), dtype=jnp.float32)
    b = jax.random.normal(k5, (512, 1024), dtype=jnp.float32)
    y3 = jax.block_until_ready(cat([a, b], dim=1))          # tiled, lane-concat
    assert jnp.array_equal(y3, jnp.concatenate([a, b], axis=1)), "tiled dim=1 mismatch"

    a0 = a.reshape(1024, 512)
    b0 = b.reshape(1024, 512)
    y4 = jax.block_until_ready(cat([a0, b0], dim=0))         # tiled, row-concat
    assert jnp.array_equal(y4, jnp.concatenate([a0, b0], axis=0)), "tiled dim=0 mismatch"

    print("KERNEL_OK")
</pallas_src>

<mosaic_0001>
module attributes {stable_mosaic.version = 11 : i64} {
  func.func @_cat_copy_kernel(%arg0: memref<2x1024xf32, #tpu.memory_space<vmem>>, %arg1: memref<2x1024xf32, #tpu.memory_space<vmem>>, %arg2: memref<3x1024xf32, #tpu.memory_space<vmem>>, %arg3: memref<7x1024xf32, #tpu.memory_space<vmem>>) attributes {dimension_semantics = [], scalar_prefetch = 0 : i64, scratch_operands = 0 : i64, tpu.core_type = #tpu.core_type<tc>} {
    %c0 = arith.constant 0 : index
    %c0_0 = arith.constant 0 : index
    %0 = vector.load %arg0[%c0, %c0_0] : memref<2x1024xf32, #tpu.memory_space<vmem>>, vector<2x1024xf32>
    %c0_1 = arith.constant 0 : index
    %c0_2 = arith.constant 0 : index
    %1 = vector.load %arg3[%c0_1, %c0_2] : memref<7x1024xf32, #tpu.memory_space<vmem>>, vector<2x1024xf32>
    tpu.vector_store %arg3[%c0_1, %c0_2], %0 {strides = array<i32>} : memref<7x1024xf32, #tpu.memory_space<vmem>>, vector<2x1024xf32>,
    %c0_3 = arith.constant 0 : index
    %c0_4 = arith.constant 0 : index
    %2 = vector.load %arg1[%c0_3, %c0_4] : memref<2x1024xf32, #tpu.memory_space<vmem>>, vector<2x1024xf32>
    %c2 = arith.constant 2 : index
    %c0_5 = arith.constant 0 : index
    %3 = vector.load %arg3[%c2, %c0_5] : memref<7x1024xf32, #tpu.memory_space<vmem>>, vector<2x1024xf32>
    tpu.vector_store %arg3[%c2, %c0_5], %2 {strides = array<i32>} : memref<7x1024xf32, #tpu.memory_space<vmem>>, vector<2x1024xf32>,
    %c0_6 = arith.constant 0 : index
    %c0_7 = arith.constant 0 : index
    %4 = vector.load %arg2[%c0_6, %c0_7] : memref<3x1024xf32, #tpu.memory_space<vmem>>, vector<3x1024xf32>
    %c4 = arith.constant 4 : index
    %c0_8 = arith.constant 0 : index
    %5 = vector.load %arg3[%c4, %c0_8] : memref<7x1024xf32, #tpu.memory_space<vmem>>, vector<3x1024xf32>
    tpu.vector_store %arg3[%c4, %c0_8], %4 {strides = array<i32>} : memref<7x1024xf32, #tpu.memory_space<vmem>>, vector<3x1024xf32>,
    return
  }
}

</mosaic_0001>

<llo_original>
// kernel: tpu_custom_call.1
$region0: #{tpu_custom_call.1}
  #allocation0 [shape = 'u32[]', space=smem, size = 0x4, offset = 0x4, fixed_abs, tag = 'smem constant byte address 0x4 - core index']
  #allocation1 [shape = 'u32[144,128]{1,0:T(1,128)}', space=vmem, size = 0x12000, scoped, tag = 'internal scratch']
  %s0 = inlined_call_operand.hbm [shape: f32[2,1024], index: 0, kind: input, shape index: {}]
  %s1 = inlined_call_operand.hbm [shape: f32[2,1024], index: 1, kind: input, shape index: {}]
  %s2 = inlined_call_operand.hbm [shape: f32[3,1024], index: 2, kind: input, shape index: {}]
  %s3 = inlined_call_operand.hbm [shape: f32[7,1024], index: 3, kind: output, shape index: {}]
  %s4 = sld [smem:[#allocation0]]
  $region34: #{tpu_custom_call.1} parent=0
    _
  %s6 = ssub.s32 1, %s4
  %s7 = scalar_select 0, %s6, %s4
  $region1: #{tpu_custom_call.1} parent=0
    #allocation2 [shape = 'u8[8192]{0}', space=vmem, size = 0x2000, scoped, tag = 'input window, operand 0, single buffered']
    #allocation3 [shape = 's32[1]{0}', space=sflag, size = 0x4, scoped, tag = 'scoped memory for tpu_custom_call.1']
    #allocation4 [shape = 's32[1]{0}', space=sflag, size = 0x4, scoped, tag = 'scoped memory for tpu_custom_call.1']
    #allocation5 [shape = 'u8[8192]{0}', space=vmem, size = 0x2000, scoped, tag = 'input window, operand 1, single buffered']
    #allocation6 [shape = 's32[1]{0}', space=sflag, size = 0x4, scoped, tag = 'scoped memory for tpu_custom_call.1']
    #allocation7 [shape = 'u8[16384]{0}', space=vmem, size = 0x4000, scoped, tag = 'input window, operand 2, single buffered']
    #allocation8 [shape = 'u8[32768]{0}', space=vmem, size = 0x8000, scoped, tag = 'output window, operand 0, single buffered']
    %8 = vsyncpa [#allocation3], 0
    %9 = vsyncpa [#allocation6], 0
    %10 = vsyncpa [#allocation4], 0
    // Predicated region
    $region2: #{tpu_custom_call.1} parent=1 // pred_check
      _
    $region3: #{tpu_custom_call.1} parent=1 // pred_check_branch
      %12 = sbr.rel (0) target = $region5
    $region4: #{tpu_custom_call.1} parent=1 // pred_region
      %s14 = ssub.s32 256, 256
      %15 = vsyncadd [#allocation3], %s14
      %s17 = sshll.u32 [#allocation2], 4
      %s18 = int_to_ptr.vmem [resolvable:$true] %s17
      %20 = dma.hbm_to_vmem [thread:$0]  %s0, 256, %s18, [#allocation3]
    $region5: #{tpu_custom_call.1} parent=1 // pred_fallthru
      _
    // Predicated region
    $region6: #{tpu_custom_call.1} parent=1 // pred_check
      _
    $region7: #{tpu_custom_call.1} parent=1 // pred_check_branch
      %22 = sbr.rel (0) target = $region9
    $region8: #{tpu_custom_call.1} parent=1 // pred_region
      %s24 = ssub.s32 256, 256
      %25 = vsyncadd [#allocation6], %s24
      %s27 = sshll.u32 [#allocation5], 4
      %s28 = int_to_ptr.vmem [resolvable:$true] %s27
      %30 = dma.hbm_to_vmem [thread:$0]  %s1, 256, %s28, [#allocation6]
    $region9: #{tpu_custom_call.1} parent=1 // pred_fallthru
      _
    // Predicated region
    $region10: #{tpu_custom_call.1} parent=1 // pred_check
      _
    $region11: #{tpu_custom_call.1} parent=1 // pred_check_branch
      %32 = sbr.rel (0) target = $region13
    $region12: #{tpu_custom_call.1} parent=1 // pred_region
      %s34 = ssub.s32 512, 512
      %35 = vsyncadd [#allocation6], %s34
      %s37 = sshll.u32 [#allocation7], 4
      %s38 = int_to_ptr.vmem [resolvable:$true] %s37
      %40 = dma.hbm_to_vmem [thread:$0]  %s2, 512, %s38, [#allocation6]
    $region13: #{tpu_custom_call.1} parent=1 // pred_fallthru
      _
    // Predicated region
    $region14: #{tpu_custom_call.1} parent=1 // pred_check
      _
    $region15: #{tpu_custom_call.1} parent=1 // pred_check_branch
      %42 = sbr.rel (0) target = $region17
    $region16: #{tpu_custom_call.1} parent=1 // pred_region
      %43 = dma.done [#allocation3], 256
    $region17: #{tpu_custom_call.1} parent=1 // pred_fallthru
      _
    // Predicated region
    $region18: #{tpu_custom_call.1} parent=1 // pred_check
      _
    $region19: #{tpu_custom_call.1} parent=1 // pred_check_branch
      %45 = sbr.rel (0) target = $region21
    $region20: #{tpu_custom_call.1} parent=1 // pred_region
      %46 = dma.done [#allocation6], 256
    $region21: #{tpu_custom_call.1} parent=1 // pred_fallthru
      _
    // Predicated region
    $region22: #{tpu_custom_call.1} parent=1 // pred_check
      _
    $region23: #{tpu_custom_call.1} parent=1 // pred_check_branch
      %48 = sbr.rel (0) target = $region25
    $region24: #{tpu_custom_call.1} parent=1 // pred_region
      %49 = dma.done [#allocation6], 512
    $region25: #{tpu_custom_call.1} parent=1 // pred_fallthru
      _
    %v50 = vld [vmem:[#allocation2] sm:$0xff]
    %v51 = vld [vmem:[#allocation2 + $0x8] sm:$0xff]
    %v54 = vcombine.high %v50, %v50
    %v56 = vunpack.c.l.s4 1983009808
    %v57 = vunpack.c.0.s8 %v56
    %v58 = vlaneseq
    %v59 = vshrl.u32 %v58, 7
    %v60 = vsub.s32 %v57, %v59
    %v61 = vrot.slane %v50, %v60
    %v63 = vunpack.c.l.s4 1983009808
    %v64 = vunpack.c.0.s8 %v63
    %v65 = vlaneseq
    %v66 = vshrl.u32 %v65, 7
    %v67 = vsub.s32 %v64, %v66
    %v68 = vrot.slane %v54, %v67
    %v69 = vcombine.high %v61, %v61
    %v70 = vcombine.high %v68, %v68
    %v71 = vcombine.high %v51, %v51
    %v73 = vunpack.c.l.s4 1983009808
    %v74 = vunpack.c.0.s8 %v73
    %v75 = vlaneseq
    %v76 = vshrl.u32 %v75, 7
    %v77 = vsub.s32 %v74, %v76
    %v78 = vrot.slane %v51, %v77
    %v80 = vunpack.c.l.s4 1983009808
    %v81 = vunpack.c.0.s8 %v80
    %v82 = vlaneseq
    %v83 = vshrl.u32 %v82, 7
    %v84 = vsub.s32 %v81, %v83
    %v85 = vrot.slane %v71, %v84
    %v86 = vcombine.high %v78, %v78
    %v87 = vcombine.high %v85, %v85
    %96 = vst [vmem:[#allocation8] sm:$0x3] %v61
    %97 = vst [vmem:[#allocation8 + $0x8] sm:$0x3] %v69
    %98 = vst [vmem:[#allocation8 + $0x10] sm:$0x3] %v68
    %99 = vst [vmem:[#allocation8 + $0x18] sm:$0x3] %v70
    %100 = vst [vmem:[#allocation8 + $0x20] sm:$0x3] %v78
    %101 = vst [vmem:[#allocation8 + $0x28] sm:$0x3] %v86
    %102 = vst [vmem:[#allocation8 + $0x30] sm:$0x3] %v85
    %103 = vst [vmem:[#allocation8 + $0x38] sm:$0x3] %v87
    %v104 = vld [vmem:[#allocation5] sm:$0xff]
    %v105 = vld [vmem:[#allocation5 + $0x8] sm:$0xff]
    %v108 = vcombine.low %v104, %v104
    %v110 = vunpack.c.l.s4 1983009808
    %v111 = vunpack.c.0.s8 %v110
    %v112 = vlaneseq
    %v113 = vshrl.u32 %v112, 7
    %v114 = vsub.s32 %v111, %v113
    %v115 = vrot.slane %v108, %v114
    %v117 = vunpack.c.l.s4 1983009808
    %v118 = vunpack.c.0.s8 %v117
    %v119 = vlaneseq
    %v120 = vshrl.u32 %v119, 7
    %v121 = vsub.s32 %v118, %v120
    %v122 = vrot.slane %v104, %v121
    %v123 = vcombine.high %v115, %v115
    %v124 = vcombine.high %v122, %v122
    %v125 = vcombine.low %v105, %v105
    %v127 = vunpack.c.l.s4 1983009808
    %v128 = vunpack.c.0.s8 %v127
    %v129 = vlaneseq
    %v130 = vshrl.u32 %v129, 7
    %v131 = vsub.s32 %v128, %v130
    %v132 = vrot.slane %v125, %v131
    %v134 = vunpack.c.l.s4 1983009808
    %v135 = vunpack.c.0.s8 %v134
    %v136 = vlaneseq
    %v137 = vshrl.u32 %v136, 7
    %v138 = vsub.s32 %v135, %v137
    %v139 = vrot.slane %v105, %v138
    %v140 = vcombine.high %v132, %v132
    %v141 = vcombine.high %v139, %v139
    %150 = vst [vmem:[#allocation8] sm:$0xc] %v115
    %151 = vst [vmem:[#allocation8 + $0x8] sm:$0xc] %v123
    %152 = vst [vmem:[#allocation8 + $0x10] sm:$0xc] %v122
    %153 = vst [vmem:[#allocation8 + $0x18] sm:$0xc] %v124
    %154 = vst [vmem:[#allocation8 + $0x20] sm:$0xc] %v132
    %155 = vst [vmem:[#allocation8 + $0x28] sm:$0xc] %v140
    %156 = vst [vmem:[#allocation8 + $0x30] sm:$0xc] %v139
    %157 = vst [vmem:[#allocation8 + $0x38] sm:$0xc] %v141
    %v158 = vld [vmem:[#allocation7] sm:$0x77]
    %v159 = vld [vmem:[#allocation7 + $0x8] sm:$0x77]
    %v160 = vld [vmem:[#allocation7 + $0x10] sm:$0x77]
    %v161 = vld [vmem:[#allocation7 + $0x18] sm:$0x77]
    %v166 = vcombine.low %v158, %v158
    %v167 = vcombine.low %v159, %v159
    %v168 = vcombine.low %v160, %v160
    %v169 = vcombine.low %v161, %v161
    %174 = vst [vmem:[#allocation8] sm:$0x70] %v166
    %175 = vst [vmem:[#allocation8 + $0x8] sm:$0x70] %v158
    %176 = vst [vmem:[#allocation8 + $0x10] sm:$0x70] %v167
    %177 = vst [vmem:[#allocation8 + $0x18] sm:$0x70] %v159
    %178 = vst [vmem:[#allocation8 + $0x20] sm:$0x70] %v168
    %179 = vst [vmem:[#allocation8 + $0x28] sm:$0x70] %v160
    %180 = vst [vmem:[#allocation8 + $0x30] sm:$0x70] %v169
    %181 = vst [vmem:[#allocation8 + $0x38] sm:$0x70] %v161
    // Predicated region
    $region26: #{tpu_custom_call.1} parent=1 // pred_check
      _
    $region27: #{tpu_custom_call.1} parent=1 // pred_check_branch
      %183 = sbr.rel (0) target = $region29
    $region28: #{tpu_custom_call.1} parent=1 // pred_region
      %s185 = ssub.s32 1024, 1024
      %186 = vsyncadd [#allocation4], %s185
      %s188 = sshll.u32 [#allocation8], 4
      %s189 = int_to_ptr.vmem [resolvable:$true] %s188
      %191 = dma.vmem_to_hbm [thread:$0]  %s189, 1024, %s3, [#allocation4]
    $region29: #{tpu_custom_call.1} parent=1 // pred_fallthru
      _
    // Predicated region
    $region30: #{tpu_custom_call.1} parent=1 // pred_check
      _
    $region31: #{tpu_custom_call.1} parent=1 // pred_check_branch
      %193 = sbr.rel (0) target = $region33
    $region32: #{tpu_custom_call.1} parent=1 // pred_region
      %194 = dma.done [#allocation4], 1024
    $region33: #{tpu_custom_call.1} parent=1 // pred_fallthru
      _
    %195 = vsyncpa [#allocation3], 1
    %196 = vsyncpa [#allocation6], 1
    %197 = vsyncpa [#allocation4], 1

</llo_original>
